<compile_context>
chip_gen: v7x
topology: tpu7x:2x2x1
jax: 0.10.0
libtpu: 0.0.40
codegen_flags: <defaults>
</compile_context>

<pallas_src>
import functools

import jax
import jax.numpy as jnp
from jax import lax
from jax.experimental import pallas as pl
from jax.experimental.pallas import tpu as pltpu

SMOOTH_NR = 1e-5  # MONAI DiceLoss defaults
SMOOTH_DR = 1e-5

LANE = 128
SUBLANE = 8


def _cdiv(a, b):
    return -(-a // b)


def _round_up(a, b):
    return _cdiv(a, b) * b


def _vmem_capacity_bytes():
    try:
        cap = int(pltpu.get_tpu_info().vmem_capacity_bytes)
        return max(cap, 32 << 20)
    except Exception:
        return 64 << 20  # conservative (v7x-sized) fallback


def _num_tensorcores():
    """Heuristic: only v7x has 2 TensorCores per chip."""
    try:
        kind = jax.devices()[0].device_kind.lower()
    except Exception:
        return 1
    return 2 if ("v7" in kind or "tpu7" in kind) else 1


def _dice_ce_kernel(logits_ref, labels_ref, out_ref, *, c_dim, c_pad):
    """Grid: (N, SPLIT, NS).  Block views:
         logits_ref: (C, Tr, 128)        native dtype
         labels_ref: (Tr, 128)           int32, -1 marks padded pixels
         out_ref:    (3*Cp + 8, 128)     f32 accumulator resident across the s axis:
                     rows [0,C) inter, [Cp,Cp+C) psum, [2Cp,2Cp+C) gsum, row 3Cp = CE.
       (Cp = C rounded up to a multiple of 8, so each stat group is sublane-aligned.)"""
    s = pl.program_id(2)

    @pl.when(s == 0)
    def _init():
        out_ref[...] = jnp.zeros_like(out_ref)

    x = logits_ref[...]                              # (C, Tr, L) native dtype
    lab = labels_ref[...]                            # (Tr, L) int32

    # Channel softmax: reductions over the leading plane axis are elementwise.
    # Max is exact in the native dtype; only the shifted values are cast to f32.
    m = jnp.max(x, axis=0)                           # (Tr, L) native
    xs = x.astype(jnp.float32) - m.astype(jnp.float32)[None]   # (C, Tr, L) f32
    e = jnp.exp(xs)                                  # (C, Tr, L)
    z = jnp.sum(e, axis=0)                           # (Tr, L)
    zinv = pl.reciprocal(z, approx=True)             # EUP, not C VPU divides
    valid = (lab >= 0).astype(jnp.float32)           # mask padded pixels
    p = e * (zinv * valid)[None]                     # probs, zeroed on pads

    # Lazy one-hot: tiny (C,1,128) iota broadcast against labels; the compare
    # feeds selects directly (no f32 one-hot block, no block-sized int32 iota).
    cidx = lax.broadcasted_iota(jnp.int32, (c_dim, 1, LANE), 0)
    eq = cidx == lab[None]                           # (C, Tr, L) bool; all-false on pads

    zero = jnp.float32(0.0)
    # Per-channel partial sums over the sublane (row) axis only -> (C, L);
    # the tiny lane reduction is deferred to the JAX epilogue.
    inter_p = jnp.sum(jnp.where(eq, p, zero), axis=1)          # (C, L)
    psum_p = jnp.sum(p, axis=1)                                # (C, L)
    gsum_p = jnp.sum(jnp.where(eq, 1.0, 0.0), axis=1)          # (C, L)

    # Cross entropy with exact log-sum-exp:  lse - x[lab] == log(z) - (x[lab] - m).
    tgt = jnp.sum(jnp.where(eq, xs, zero), axis=0)             # (Tr, L)
    ce_p = jnp.sum((jnp.log(z) - tgt) * valid, axis=0)         # (L,)

    # One sublane-aligned `+=` per stat group (no concat relayout).
    out_ref[0:c_dim, :] += inter_p
    out_ref[c_pad:c_pad + c_dim, :] += psum_p
    out_ref[2 * c_pad:2 * c_pad + c_dim, :] += gsum_p
    out_ref[3 * c_pad:3 * c_pad + 1, :] += ce_p[None]


def _plan(S, C, itemsize, max_block_rows, split):
    """Pick (tile_rows, split, ns_per, rows_pad) for the spatial reduction."""
    rows = _cdiv(S, LANE)
    if max_block_rows is None:
        # Temp-aware working-set budget: double-buffered native logits block plus
        # ~4 f32 block-sized temporaries (xs, e, p, selects) must fit in ~1/3 VMEM.
        budget = _vmem_capacity_bytes() // 3
        per_row = C * LANE * (2 * itemsize + 4 * 4)
        max_block_rows = max(SUBLANE, (budget // per_row) // SUBLANE * SUBLANE)
    else:
        max_block_rows = max(SUBLANE, (max_block_rows // SUBLANE) * SUBLANE)

    if rows <= max_block_rows:
        return rows, 1, 1, rows           # single block per sample

    tile_rows = max_block_rows
    num_s = _cdiv(rows, tile_rows)
    if split is None:
        split = _num_tensorcores()        # 2-way split only on multi-TC parts
    if split > 1 and num_s >= split:
        num_s = _round_up(num_s, split)
        ns_per = num_s // split
    else:
        split, ns_per = 1, num_s
    return tile_rows, split, ns_per, split * ns_per * tile_rows


def dice_ce_loss(y_pred, y_true, *, max_block_rows=None, split=None):
    """y_pred: (N, C, H, W) float logits (kept in native dtype);
       y_true: (N, 1, H, W) class indices (float or int)."""
    N, C, H, W = y_pred.shape
    S = H * W
    itemsize = jnp.dtype(y_pred.dtype).itemsize
    tile_rows, split, ns_per, rows_pad = _plan(S, C, itemsize, max_block_rows, split)
    s_pad = rows_pad * LANE

    logits = y_pred.reshape(N, C, S)                    # no wrapper f32 up-cast
    labels = y_true.reshape(N, S).astype(jnp.int32)
    if s_pad != S:
        logits = jnp.pad(logits, ((0, 0), (0, 0), (0, s_pad - S)))
        labels = jnp.pad(labels, ((0, 0), (0, s_pad - S)), constant_values=-1)
    logits = logits.reshape(N, C, rows_pad, LANE)
    labels = labels.reshape(N, 1, rows_pad, LANE)

    c_pad = _round_up(C, SUBLANE)
    rows_out = 3 * c_pad + SUBLANE          # inter | psum | gsum | CE (row 3*c_pad)

    # VMEM budget: double-buffered inputs + resident output + f32 in-kernel temps.
    logits_blk = C * tile_rows * LANE * itemsize
    labels_blk = tile_rows * LANE * 4
    out_blk = rows_out * LANE * 4
    temps = 5 * C * tile_rows * LANE * 4
    need = 2 * (logits_blk + labels_blk) + 2 * out_blk + temps + (2 << 20)
    vmem_cap = _vmem_capacity_bytes()
    cap = max(min(vmem_cap - (8 << 20), 100 << 20), 16 << 20)
    vmem_limit = int(min(max(need, 16 << 20), cap))

    cost = pl.CostEstimate(
        flops=int(10 * N * C * rows_pad * LANE),
        transcendentals=int(N * (C + 2) * rows_pad * LANE),
        bytes_accessed=int(logits.size * itemsize + labels.size * 4
                           + N * split * rows_out * LANE * 4),
    )

    kernel = functools.partial(_dice_ce_kernel, c_dim=C, c_pad=c_pad)

    stats = pl.pallas_call(
        kernel,
        out_shape=jax.ShapeDtypeStruct((N, split, rows_out, LANE), jnp.float32),
        grid_spec=pltpu.PrefetchScalarGridSpec(
            num_scalar_prefetch=0,
            grid=(N, split, ns_per),
            in_specs=[
                pl.BlockSpec((None, C, tile_rows, LANE),
                             lambda n, h, s: (n, 0, h * ns_per + s, 0)),
                pl.BlockSpec((None, None, tile_rows, LANE),
                             lambda n, h, s: (n, 0, h * ns_per + s, 0)),
            ],
            out_specs=pl.BlockSpec((None, None, rows_out, LANE),
                                   lambda n, h, s: (n, h, 0, 0)),
        ),
        compiler_params=pltpu.CompilerParams(
            dimension_semantics=("parallel", "parallel", "arbitrary"),
            vmem_limit_bytes=vmem_limit,
        ),
        cost_estimate=cost,
    )(logits, labels)

    # JAX-side epilogue: reduce the per-split, per-lane partial sums.
    totals = jnp.sum(stats, axis=(1, 3))                # (N, rows_out)
    inter = totals[:, 0:C]
    psum = totals[:, c_pad:c_pad + C]
    gsum = totals[:, 2 * c_pad:2 * c_pad + C]
    ce_sum = jnp.sum(totals[:, 3 * c_pad])

    dice_per = 1.0 - (2.0 * inter + SMOOTH_NR) / (gsum + psum + SMOOTH_DR)
    dice = jnp.mean(dice_per)          # MONAI DiceLoss: mean over (N, C)
    ce_mean = ce_sum / (N * S)         # nn.CrossEntropyLoss: mean over N*H*W
    return dice + ce_mean


def _reference(y_pred, y_true):
    """Pure-JAX reference matching the PyTorch/MONAI semantics."""
    N, C, H, W = y_pred.shape
    logits = y_pred.astype(jnp.float32)
    lab = y_true.reshape(N, H, W).astype(jnp.int32)
    logp = jax.nn.log_softmax(logits, axis=1)
    p = jnp.exp(logp)
    onehot = jax.nn.one_hot(lab, C, axis=1, dtype=jnp.float32)  # (N, C, H, W)
    inter = jnp.sum(p * onehot, axis=(2, 3))
    psum = jnp.sum(p, axis=(2, 3))
    gsum = jnp.sum(onehot, axis=(2, 3))
    dice = jnp.mean(1.0 - (2.0 * inter + SMOOTH_NR) / (gsum + psum + SMOOTH_DR))
    ce = -jnp.mean(jnp.sum(logp * onehot, axis=1))
    return dice + ce


if __name__ == "__main__":
    key = jax.random.PRNGKey(0)
    k1, k2, k3, k4 = jax.random.split(key, 4)

    # 1) Small shape implied by the module: single-block-per-sample path.
    N, C, H, W = 2, 4, 16, 16
    y_pred = jax.random.normal(k1, (N, C, H, W), dtype=jnp.float32)
    y_true = jax.random.randint(k2, (N, 1, H, W), 0, C).astype(jnp.float32)
    loss = jax.block_until_ready(dice_ce_loss(y_pred, y_true))
    ref = jax.block_until_ready(_reference(y_pred, y_true))
    assert jnp.allclose(loss, ref, rtol=5e-3, atol=5e-3), (loss, ref)

    # 2) Odd spatial size + forced small tile + forced 2-way split: exercises the
    #    tiled reduction axis, the split grid axis and the padded-pixel masking.
    N2, C2, H2, W2 = 2, 3, 61, 67
    y_pred2 = jax.random.normal(k3, (N2, C2, H2, W2), dtype=jnp.float32)
    y_true2 = jax.random.randint(k4, (N2, 1, H2, W2), 0, C2).astype(jnp.float32)
    loss2 = jax.block_until_ready(
        dice_ce_loss(y_pred2, y_true2, max_block_rows=8, split=2))
    ref2 = jax.block_until_ready(_reference(y_pred2, y_true2))
    assert jnp.allclose(loss2, ref2, rtol=5e-3, atol=5e-3), (loss2, ref2)

    # 3) Native bf16 logits (no wrapper-side f32 up-cast; native-dtype max,
    #    f32 shift/exp/accumulate in-kernel).
    y_pred3 = y_pred.astype(jnp.bfloat16)
    loss3 = jax.block_until_ready(dice_ce_loss(y_pred3, y_true))
    ref3 = jax.block_until_ready(_reference(y_pred3, y_true))
    assert jnp.allclose(loss3, ref3, rtol=5e-3, atol=5e-3), (loss3, ref3)

    print("KERNEL_OK")
</pallas_src>

<mosaic_0001>
module attributes {stable_mosaic.version = 11 : i64} {
  func.func @_dice_ce_kernel(%arg0: i32, %arg1: i32, %arg2: i32, %arg3: memref<1x4x2x128xf32, #tpu.memory_space<vmem>>, %arg4: memref<1x1x2x128xi32, #tpu.memory_space<vmem>>, %arg5: memref<1x1x32x128xf32, #tpu.memory_space<vmem>>) attributes {dimension_semantics = [#tpu.dimension_semantics<parallel>, #tpu.dimension_semantics<parallel>, #tpu.dimension_semantics<arbitrary>], iteration_bounds = array<i64: 2, 1, 1>, scalar_prefetch = 0 : i64, scratch_operands = 0 : i64, tpu.core_type = #tpu.core_type<tc>, window_params = [{transform_indices = @transform_0, window_bounds = array<i64: 1, 4, 2, 128>}, {transform_indices = @transform_1, window_bounds = array<i64: 1, 1, 2, 128>}, {transform_indices = @transform_2, window_bounds = array<i64: 1, 1, 32, 128>}]} {
    %c0_i32 = arith.constant 0 : i32
    %0 = arith.cmpi eq, %arg2, %c0_i32 : i32
    %1 = arith.extui %0 : i1 to i32
    %c0_i32_0 = arith.constant 0 : i32
    %2 = arith.cmpi ne, %1, %c0_i32_0 : i32
    scf.if %2 {
      %cst_48 = arith.constant 0.000000e+00 : f32
      %67 = vector.broadcast %cst_48 : f32 to vector<32x128xf32>
      %c0_49 = arith.constant 0 : index
      %c0_50 = arith.constant 0 : index
      %c0_51 = arith.constant 0 : index
      %c0_52 = arith.constant 0 : index
      %68 = vector.load %arg5[%c0_49, %c0_50, %c0_51, %c0_52] : memref<1x1x32x128xf32, #tpu.memory_space<vmem>>, vector<1x1x32x128xf32>
      %69 = vector.shape_cast %68 : vector<1x1x32x128xf32> to vector<32x128xf32>
      %70 = vector.shape_cast %67 : vector<32x128xf32> to vector<1x1x32x128xf32>
      tpu.vector_store %arg5[%c0_49, %c0_50, %c0_51, %c0_52], %70 {strides = array<i32>} : memref<1x1x32x128xf32, #tpu.memory_space<vmem>>, vector<1x1x32x128xf32>,
    } else {
    }
    %c0 = arith.constant 0 : index
    %c0_1 = arith.constant 0 : index
    %c0_2 = arith.constant 0 : index
    %c0_3 = arith.constant 0 : index
    %3 = vector.load %arg3[%c0, %c0_1, %c0_2, %c0_3] : memref<1x4x2x128xf32, #tpu.memory_space<vmem>>, vector<1x4x2x128xf32>
    %4 = vector.shape_cast %3 : vector<1x4x2x128xf32> to vector<4x2x128xf32>
    %c0_4 = arith.constant 0 : index
    %c0_5 = arith.constant 0 : index
    %c0_6 = arith.constant 0 : index
    %c0_7 = arith.constant 0 : index
    %5 = vector.load %arg4[%c0_4, %c0_5, %c0_6, %c0_7] : memref<1x1x2x128xi32, #tpu.memory_space<vmem>>, vector<1x1x2x128xi32>
    %6 = vector.shape_cast %5 : vector<1x1x2x128xi32> to vector<2x128xi32>
    %cst = arith.constant dense<0xFF800000> : vector<2x128xf32>
    %7 = vector.multi_reduction <maximumf>, %4, %cst [0] : vector<4x2x128xf32> to vector<2x128xf32>
    %8 = vector.shape_cast %7 : vector<2x128xf32> to vector<1x2x128xf32>
    %9 = vector.broadcast %8 : vector<1x2x128xf32> to vector<4x2x128xf32>
    %10 = arith.subf %4, %9 : vector<4x2x128xf32>
    %11 = math.exp %10 : vector<4x2x128xf32>
    %cst_8 = arith.constant dense<0.000000e+00> : vector<2x128xf32>
    %12 = vector.multi_reduction <add>, %11, %cst_8 [0] : vector<4x2x128xf32> to vector<2x128xf32>
    %13 = tpu.reciprocal %12 {approx = true} : vector<2x128xf32> -> vector<2x128xf32>
    %c0_i32_9 = arith.constant 0 : i32
    %14 = vector.broadcast %c0_i32_9 : i32 to vector<2x128xi32>
    %15 = arith.cmpi sge, %6, %14 : vector<2x128xi32>
    %16 = arith.extui %15 : vector<2x128xi1> to vector<2x128xi32>
    %17 = arith.sitofp %16 : vector<2x128xi32> to vector<2x128xf32>
    %18 = arith.mulf %13, %17 : vector<2x128xf32>
    %19 = vector.shape_cast %18 : vector<2x128xf32> to vector<1x2x128xf32>
    %20 = vector.broadcast %19 : vector<1x2x128xf32> to vector<4x2x128xf32>
    %21 = arith.mulf %11, %20 : vector<4x2x128xf32>
    %22 = tpu.iota {dimensions = array<i32: 0>} : vector<4x1x128xi32>
    %23 = vector.shape_cast %6 : vector<2x128xi32> to vector<1x2x128xi32>
    %24 = vector.broadcast %22 : vector<4x1x128xi32> to vector<4x2x128xi32>
    %25 = vector.broadcast %23 : vector<1x2x128xi32> to vector<4x2x128xi32>
    %26 = arith.cmpi eq, %24, %25 : vector<4x2x128xi32>
    %cst_10 = arith.constant 0.000000e+00 : f32
    %27 = vector.broadcast %cst_10 : f32 to vector<4x2x128xf32>
    %28 = arith.select %26, %21, %27 : vector<4x2x128xi1>, vector<4x2x128xf32>
    %cst_11 = arith.constant dense<0.000000e+00> : vector<4x128xf32>
    %29 = vector.multi_reduction <add>, %28, %cst_11 [1] : vector<4x2x128xf32> to vector<4x128xf32>
    %cst_12 = arith.constant dense<0.000000e+00> : vector<4x128xf32>
    %30 = vector.multi_reduction <add>, %21, %cst_12 [1] : vector<4x2x128xf32> to vector<4x128xf32>
    %cst_13 = arith.constant 1.000000e+00 : f32
    %cst_14 = arith.constant 0.000000e+00 : f32
    %31 = vector.broadcast %cst_13 : f32 to vector<4x2x128xf32>
    %32 = vector.broadcast %cst_14 : f32 to vector<4x2x128xf32>
    %33 = arith.select %26, %31, %32 : vector<4x2x128xi1>, vector<4x2x128xf32>
    %cst_15 = arith.constant dense<0.000000e+00> : vector<4x128xf32>
    %34 = vector.multi_reduction <add>, %33, %cst_15 [1] : vector<4x2x128xf32> to vector<4x128xf32>
    %cst_16 = arith.constant 0.000000e+00 : f32
    %35 = vector.broadcast %cst_16 : f32 to vector<4x2x128xf32>
    %36 = arith.select %26, %10, %35 : vector<4x2x128xi1>, vector<4x2x128xf32>
    %cst_17 = arith.constant dense<0.000000e+00> : vector<2x128xf32>
    %37 = vector.multi_reduction <add>, %36, %cst_17 [0] : vector<4x2x128xf32> to vector<2x128xf32>
    %38 = math.log %12 : vector<2x128xf32>
    %39 = arith.subf %38, %37 : vector<2x128xf32>
    %40 = arith.mulf %39, %17 : vector<2x128xf32>
    %cst_18 = arith.constant dense<0.000000e+00> : vector<128xf32>
    %41 = vector.multi_reduction <add>, %40, %cst_18 [0] : vector<2x128xf32> to vector<128xf32>
    %c0_19 = arith.constant 0 : index
    %c0_20 = arith.constant 0 : index
    %c0_21 = arith.constant 0 : index
    %c0_22 = arith.constant 0 : index
    %42 = vector.load %arg5[%c0_19, %c0_20, %c0_21, %c0_22] : memref<1x1x32x128xf32, #tpu.memory_space<vmem>>, vector<1x1x4x128xf32>
    %43 = vector.shape_cast %42 : vector<1x1x4x128xf32> to vector<4x128xf32>
    %44 = arith.addf %43, %29 : vector<4x128xf32>
    %c0_23 = arith.constant 0 : index
    %c0_24 = arith.constant 0 : index
    %c0_25 = arith.constant 0 : index
    %c0_26 = arith.constant 0 : index
    %45 = vector.load %arg5[%c0_23, %c0_24, %c0_25, %c0_26] : memref<1x1x32x128xf32, #tpu.memory_space<vmem>>, vector<1x1x4x128xf32>
    %46 = vector.shape_cast %45 : vector<1x1x4x128xf32> to vector<4x128xf32>
    %47 = vector.shape_cast %44 : vector<4x128xf32> to vector<1x1x4x128xf32>
    tpu.vector_store %arg5[%c0_23, %c0_24, %c0_25, %c0_26], %47 {strides = array<i32>} : memref<1x1x32x128xf32, #tpu.memory_space<vmem>>, vector<1x1x4x128xf32>,
    %c0_27 = arith.constant 0 : index
    %c0_28 = arith.constant 0 : index
    %c8 = arith.constant 8 : index
    %c0_29 = arith.constant 0 : index
    %48 = vector.load %arg5[%c0_27, %c0_28, %c8, %c0_29] : memref<1x1x32x128xf32, #tpu.memory_space<vmem>>, vector<1x1x4x128xf32>
    %49 = vector.shape_cast %48 : vector<1x1x4x128xf32> to vector<4x128xf32>
    %50 = arith.addf %49, %30 : vector<4x128xf32>
    %c0_30 = arith.constant 0 : index
    %c0_31 = arith.constant 0 : index
    %c8_32 = arith.constant 8 : index
    %c0_33 = arith.constant 0 : index
    %51 = vector.load %arg5[%c0_30, %c0_31, %c8_32, %c0_33] : memref<1x1x32x128xf32, #tpu.memory_space<vmem>>, vector<1x1x4x128xf32>
    %52 = vector.shape_cast %51 : vector<1x1x4x128xf32> to vector<4x128xf32>
    %53 = vector.shape_cast %50 : vector<4x128xf32> to vector<1x1x4x128xf32>
    tpu.vector_store %arg5[%c0_30, %c0_31, %c8_32, %c0_33], %53 {strides = array<i32>} : memref<1x1x32x128xf32, #tpu.memory_space<vmem>>, vector<1x1x4x128xf32>,
    %c0_34 = arith.constant 0 : index
    %c0_35 = arith.constant 0 : index
    %c16 = arith.constant 16 : index
    %c0_36 = arith.constant 0 : index
    %54 = vector.load %arg5[%c0_34, %c0_35, %c16, %c0_36] : memref<1x1x32x128xf32, #tpu.memory_space<vmem>>, vector<1x1x4x128xf32>
    %55 = vector.shape_cast %54 : vector<1x1x4x128xf32> to vector<4x128xf32>
    %56 = arith.addf %55, %34 : vector<4x128xf32>
    %c0_37 = arith.constant 0 : index
    %c0_38 = arith.constant 0 : index
    %c16_39 = arith.constant 16 : index
    %c0_40 = arith.constant 0 : index
    %57 = vector.load %arg5[%c0_37, %c0_38, %c16_39, %c0_40] : memref<1x1x32x128xf32, #tpu.memory_space<vmem>>, vector<1x1x4x128xf32>
    %58 = vector.shape_cast %57 : vector<1x1x4x128xf32> to vector<4x128xf32>
    %59 = vector.shape_cast %56 : vector<4x128xf32> to vector<1x1x4x128xf32>
    tpu.vector_store %arg5[%c0_37, %c0_38, %c16_39, %c0_40], %59 {strides = array<i32>} : memref<1x1x32x128xf32, #tpu.memory_space<vmem>>, vector<1x1x4x128xf32>,
    %c0_41 = arith.constant 0 : index
    %c0_42 = arith.constant 0 : index
    %c24 = arith.constant 24 : index
    %c0_43 = arith.constant 0 : index
    %60 = vector.load %arg5[%c0_41, %c0_42, %c24, %c0_43] : memref<1x1x32x128xf32, #tpu.memory_space<vmem>>, vector<1x1x1x128xf32>
    %61 = vector.shape_cast %60 : vector<1x1x1x128xf32> to vector<1x128xf32>
    %62 = vector.shape_cast %41 : vector<128xf32> to vector<1x128xf32>
    %63 = arith.addf %61, %62 : vector<1x128xf32>
    %c0_44 = arith.constant 0 : index
    %c0_45 = arith.constant 0 : index
    %c24_46 = arith.constant 24 : index
    %c0_47 = arith.constant 0 : index
    %64 = vector.load %arg5[%c0_44, %c0_45, %c24_46, %c0_47] : memref<1x1x32x128xf32, #tpu.memory_space<vmem>>, vector<1x1x1x128xf32>
    %65 = vector.shape_cast %64 : vector<1x1x1x128xf32> to vector<1x128xf32>
    %66 = vector.shape_cast %63 : vector<1x128xf32> to vector<1x1x1x128xf32>
    tpu.vector_store %arg5[%c0_44, %c0_45, %c24_46, %c0_47], %66 {strides = array<i32>} : memref<1x1x32x128xf32, #tpu.memory_space<vmem>>, vector<1x1x1x128xf32>,
    return
  }
  func.func @transform_0(%arg0: i32, %arg1: i32, %arg2: i32) -> (i32, i32, i32, i32) {
    %c1_i32 = arith.constant 1 : i32
    %0 = arith.muli %arg1, %c1_i32 : i32
    %1 = arith.addi %0, %arg2 : i32
    %c0_i32 = arith.constant 0 : i32
    %c0_i32_0 = arith.constant 0 : i32
    %c0_i32_1 = arith.constant 0 : i32
    return %arg0, %c0_i32, %1, %c0_i32_0 : i32, i32, i32, i32
  }
  func.func @transform_1(%arg0: i32, %arg1: i32, %arg2: i32) -> (i32, i32, i32, i32) {
    %c1_i32 = arith.constant 1 : i32
    %0 = arith.muli %arg1, %c1_i32 : i32
    %1 = arith.addi %0, %arg2 : i32
    %c0_i32 = arith.constant 0 : i32
    %c0_i32_0 = arith.constant 0 : i32
    %c0_i32_1 = arith.constant 0 : i32
    return %arg0, %c0_i32, %1, %c0_i32_0 : i32, i32, i32, i32
  }
  func.func @transform_2(%arg0: i32, %arg1: i32, %arg2: i32) -> (i32, i32, i32, i32) {
    %c0_i32 = arith.constant 0 : i32
    %c0_i32_0 = arith.constant 0 : i32
    %c0_i32_1 = arith.constant 0 : i32
    return %arg0, %arg1, %c0_i32, %c0_i32_0 : i32, i32, i32, i32
  }
}

</mosaic_0001>

<llo_original>
// kernel: tpu_custom_call.1
$region0: #{tpu_custom_call.1}
  #allocation0 [shape = 'u32[]', space=smem, size = 0x4, offset = 0x4, fixed_abs, tag = 'smem constant byte address 0x4 - core index']
  #allocation1 [shape = 'u32[144,128]{1,0:T(1,128)}', space=vmem, size = 0x12000, scoped, tag = 'internal scratch']
  %s0 = inlined_call_operand.hbm [shape: f32[2,4,2,128], index: 0, kind: input, shape index: {}]
  %s1 = inlined_call_operand.hbm [shape: s32[2,1,2,128], index: 1, kind: input, shape index: {}]
  %s2 = inlined_call_operand.hbm [shape: f32[2,1,32,128], index: 2, kind: output, shape index: {}]
  %s3 = sld [smem:[#allocation0]]
  $region53: #{tpu_custom_call.1} parent=0
    _
  %s5 = ssub.s32 1, %s3
  %s6 = scalar_select 0, %s5, %s3
  $region1: #{tpu_custom_call.1} parent=0
    #allocation2 [shape = 'u8[8192]{0}', space=vmem, size = 0x2000, scoped, tag = 'input window, operand 0']
    #allocation3 [shape = 's32[2]{0}', space=sflag, size = 0x8, scoped, tag = 'scoped memory for tpu_custom_call.1']
    #allocation4 [shape = 's32[2]{0}', space=sflag, size = 0x8, scoped, tag = 'scoped memory for tpu_custom_call.1']
    #allocation5 [shape = 'u8[2048]{0}', space=vmem, size = 0x800, scoped, tag = 'input window, operand 1']
    #allocation6 [shape = 's32[2]{0}', space=sflag, size = 0x8, scoped, tag = 'scoped memory for tpu_custom_call.1']
    #allocation7 [shape = 'u8[32768]{0}', space=vmem, size = 0x8000, scoped, tag = 'output window, operand 0']
    %7 = vsyncpa [#allocation3], 0
    %s8 = scalar_lea.sflag [#allocation3], 1
    %9 = vsyncpa %s8, 0
    %10 = vsyncpa [#allocation6], 0
    %s11 = scalar_lea.sflag [#allocation6], 1
    %12 = vsyncpa %s11, 0
    %13 = vsyncpa [#allocation4], 0
    %s14 = scalar_lea.sflag [#allocation4], 1
    %15 = vsyncpa %s14, 0
    loop: start=0, step=1, limit=4
    $region2: #{tpu_custom_call.1} parent=1 // loop_pre_header
      _
    $region3: #{tpu_custom_call.1} parent=1 // loop_header
      %s17 = sphi 0, %s21
      %p18 = scmp.ge.s32.totalorder %s17, 4
      %s24 = sphi 0, %s43
      %s25 = sphi 0, %s39
      %s26 = sphi 0, %s35
      %s27 = sphi 0, %s24
      %s28 = sphi 0, %s25
      %s29 = sphi 0, %s26
      %s30 = sphi 0, %s27
      %s31 = sphi 0, %s28
      %s32 = sphi 0, %s29
      %s50 = sphi 0, %s52
      %s53 = sphi 0, %s50
      %s54 = sphi 0, %s53
      %s70 = sphi 0, %s54
      %s80 = sphi 0, %s82
      %s83 = sphi 0, %s80
      %s84 = sphi 0, %s83
      %s100 = sphi 0, %s84
      %s108 = sphi 0, %s110
      %s111 = sphi 0, %s108
      %s112 = sphi 0, %s111
      %s128 = sphi 0, %s112
    $region4: #{tpu_custom_call.1} parent=1 // loop_header_branch
      %20 = sbr.rel (%p18) target = $region8
    $region5: #{tpu_custom_call.1} parent=1 // loop_body
      %s22 = ssub.s32 %s17, 1
      %s23 = ssub.s32 %s17, 2
      %s33 = sadd.s32 1, %s26
      %p34 = scmp.ge.s32.totalorder %s33, 1
      %s35 = scalar_select %p34, 0, %s33
      %s36 = sadd.s32 1, %s25
      %s37 = scalar_select %p34, %s36, %s25
      %p38 = scmp.ge.s32.totalorder %s37, 1
      %s39 = scalar_select %p38, 0, %s37
      %s40 = sadd.s32 1, %s24
      %s41 = scalar_select %p38, %s40, %s24
      %p42 = scmp.ge.s32.totalorder %s41, 2
      %s43 = scalar_select %p42, 0, %s41
      %s44 = sadd.s32 %s25, %s26
      %s45 = sadd.s32 %s39, %s35
      %s46 = ssub.s32 %s24, %s43
      %s47 = ssub.s32 %s44, %s45
      %s48 = sor.u32 %s46, %s47
      %p49 = scmp.eq.s32.totalorder %s48, 0
      %s51 = sadd.s32 %s50, 1
      %s52 = scalar_select %p49, %s50, %s51
      %p55 = pneg %p49
      %p56 = scmp.eq.s32.totalorder %s17, 1
      %p57 = por %p55, %p56
      %p58 = scmp.ne.s32.totalorder %s50, %s53
      %p59 = scmp.eq.s32.totalorder %s17, 0
      %p60 = por %p58, %p59
      %p61 = scmp.ne.s32.totalorder %s50, %s53
      %p62 = scmp.eq.s32.totalorder %s22, 1
      %p63 = por %p61, %p62
      %p64 = scmp.ne.s32.totalorder %s53, %s54
      %p65 = scmp.eq.s32.totalorder %s22, 0
      %p66 = por %p64, %p65
      %p67 = scmp.ne.s32.totalorder %s53, %s54
      %p68 = scmp.eq.s32.totalorder %s23, 1
      %p69 = por %p67, %p68
      %p71 = scmp.ne.s32.totalorder %s54, %s70
      %p72 = scmp.eq.s32.totalorder %s23, 0
      %p73 = por %p71, %p72
      %s74 = sadd.s32 %s25, %s26
      %s75 = sadd.s32 %s39, %s35
      %s76 = ssub.s32 %s24, %s43
      %s77 = ssub.s32 %s74, %s75
      %s78 = sor.u32 %s76, %s77
      %p79 = scmp.eq.s32.totalorder %s78, 0
      %s81 = sadd.s32 %s80, 1
      %s82 = scalar_select %p79, %s80, %s81
      %p85 = pneg %p79
      %p86 = scmp.eq.s32.totalorder %s17, 1
      %p87 = por %p85, %p86
      %p88 = scmp.ne.s32.totalorder %s80, %s83
      %p89 = scmp.eq.s32.totalorder %s17, 0
      %p90 = por %p88, %p89
      %p91 = scmp.ne.s32.totalorder %s80, %s83
      %p92 = scmp.eq.s32.totalorder %s22, 1
      %p93 = por %p91, %p92
      %p94 = scmp.ne.s32.totalorder %s83, %s84
      %p95 = scmp.eq.s32.totalorder %s22, 0
      %p96 = por %p94, %p95
      %p97 = scmp.ne.s32.totalorder %s83, %s84
      %p98 = scmp.eq.s32.totalorder %s23, 1
      %p99 = por %p97, %p98
      %p101 = scmp.ne.s32.totalorder %s84, %s100
      %p102 = scmp.eq.s32.totalorder %s23, 0
      %p103 = por %p101, %p102
      %s104 = ssub.s32 %s24, %s43
      %s105 = ssub.s32 %s25, %s39
      %s106 = sor.u32 %s104, %s105
      %p107 = scmp.eq.s32.totalorder %s106, 0
      %s109 = sadd.s32 %s108, 1
      %s110 = scalar_select %p107, %s108, %s109
      %p113 = pneg %p107
      %p114 = scmp.eq.s32.totalorder %s17, 1
      %p115 = por %p113, %p114
      %p116 = scmp.ne.s32.totalorder %s108, %s111
      %p117 = scmp.eq.s32.totalorder %s17, 0
      %p118 = por %p116, %p117
      %p119 = scmp.ne.s32.totalorder %s108, %s111
      %p120 = scmp.eq.s32.totalorder %s22, 1
      %p121 = por %p119, %p120
      %p122 = scmp.ne.s32.totalorder %s111, %s112
      %p123 = scmp.eq.s32.totalorder %s22, 0
      %p124 = por %p122, %p123
      %p125 = scmp.ne.s32.totalorder %s111, %s112
      %p126 = scmp.eq.s32.totalorder %s23, 1
      %p127 = por %p125, %p126
      %p129 = scmp.ne.s32.totalorder %s112, %s128
      %p130 = scmp.eq.s32.totalorder %s23, 0
      %p131 = por %p129, %p130
      %p132 = scmp.le.s32.totalorder 1, %s17
      %p133 = scmp.lt.s32.totalorder %s17, 3
      %p134 = pnand %p132, %p133
      %p135 = pneg %p134
      // Predicated region
      $region9: #{tpu_custom_call.1} parent=5 // pred_check
        _
      $region10: #{tpu_custom_call.1} parent=5 // pred_check_branch
        %137 = sbr.rel (%p134) target = $region12
      $region11: #{tpu_custom_call.1} parent=5 // pred_region
        %s138 = ssub.s32 %s17, 1
      $region12: #{tpu_custom_call.1} parent=5 // pred_fallthru
        _
      %p139 = scmp.lt.s32.totalorder %s17, 2
      // Predicated region
      $region13: #{tpu_custom_call.1} parent=5 // pred_check
        %p140 = pneg %p139
      $region14: #{tpu_custom_call.1} parent=5 // pred_check_branch
        %142 = sbr.rel (%p140) target = $region16
      $region15: #{tpu_custom_call.1} parent=5 // pred_region
        // Predicated region
        $region17: #{tpu_custom_call.1} parent=15 // pred_check
          %p143 = pneg %p60
        $region18: #{tpu_custom_call.1} parent=15 // pred_check_branch
          %145 = sbr.rel (%p143) target = $region20
        $region19: #{tpu_custom_call.1} parent=15 // pred_region
          %s146 = sand.u32 %s50, 1
          %s147 = scalar_lea.sflag [#allocation3], %s146
          %s148 = sand.u32 %s50, 1
          %s149 = smul.addr %s148, 8
          %s150 = scalar_lea.vmem [#allocation2], %s149
          %s151 = sadd.s32 %s25, %s26
          %s153 = ssub.s32 128, 128
          %154 = vsyncadd %s147, %s153
          %s155 = smul.addr %s24, 4
          %s156 = sadd.s32 %s151, %s155
          %s157 = smul.addr %s156, 32
          %s158 = scalar_lea.hbm %s0, %s157
          %s159 = sshll.u32 %s150, 4
          %s160 = int_to_ptr.vmem [resolvable:$true] %s159
          %165 = dma.hbm_to_vmem [thread:$0]  %s158, 128, %s160, %s147, 32, 32, 2
        $region20: #{tpu_custom_call.1} parent=15 // pred_fallthru
          _
        // Predicated region
        $region21: #{tpu_custom_call.1} parent=15 // pred_check
          %p166 = pneg %p90
        $region22: #{tpu_custom_call.1} parent=15 // pred_check_branch
          %168 = sbr.rel (%p166) target = $region24
        $region23: #{tpu_custom_call.1} parent=15 // pred_region
          %s169 = sand.u32 %s80, 1
          %s170 = scalar_lea.sflag [#allocation6], %s169
          %s171 = sand.u32 %s80, 1
          %s172 = smul.addr %s171, 2
          %s173 = scalar_lea.vmem [#allocation5], %s172
          %s174 = sadd.s32 %s25, %s26
          %s176 = ssub.s32 32, 32
          %177 = vsyncadd %s170, %s176
          %s178 = sadd.s32 %s174, %s24
          %s179 = smul.addr %s178, 32
          %s180 = scalar_lea.hbm %s1, %s179
          %s182 = sshll.u32 %s173, 4
          %s183 = int_to_ptr.vmem [resolvable:$true] %s182
          %185 = dma.hbm_to_vmem [thread:$0]  %s180, 32, %s183, %s170
        $region24: #{tpu_custom_call.1} parent=15 // pred_fallthru
          _
      $region16: #{tpu_custom_call.1} parent=5 // pred_fallthru
        _
      %p186 = scmp.le.s32.totalorder 1, %s17
      %p187 = scmp.lt.s32.totalorder %s17, 3
      %p188 = pnand %p186, %p187
      %p189 = pneg %p188
      // Predicated region
      $region25: #{tpu_custom_call.1} parent=5 // pred_check
        _
      $region26: #{tpu_custom_call.1} parent=5 // pred_check_branch
        %191 = sbr.rel (%p188) target = $region28
      $region27: #{tpu_custom_call.1} parent=5 // pred_region
        %s192 = ssub.s32 %s17, 1
        %s193 = sand.u32 %s53, 1
        %s194 = scalar_lea.sflag [#allocation3], %s193
        %s195 = sand.u32 %s53, 1
        %s196 = smul.addr %s195, 8
        %s197 = scalar_lea.vmem [#allocation2], %s196
        // Predicated region
        $region29: #{tpu_custom_call.1} parent=27 // pred_check
          %p198 = pneg %p66
        $region30: #{tpu_custom_call.1} parent=27 // pred_check_branch
          %200 = sbr.rel (%p198) target = $region32
        $region31: #{tpu_custom_call.1} parent=27 // pred_region
          %201 = dma.done %s194, 128
        $region32: #{tpu_custom_call.1} parent=27 // pred_fallthru
          _
        %s202 = sand.u32 %s83, 1
        %s203 = scalar_lea.sflag [#allocation6], %s202
        %s204 = sand.u32 %s83, 1
        %s205 = smul.addr %s204, 2
        %s206 = scalar_lea.vmem [#allocation5], %s205
        // Predicated region
        $region33: #{tpu_custom_call.1} parent=27 // pred_check
          %p207 = pneg %p96
        $region34: #{tpu_custom_call.1} parent=27 // pred_check_branch
          %209 = sbr.rel (%p207) target = $region36
        $region35: #{tpu_custom_call.1} parent=27 // pred_region
          %210 = dma.done %s203, 32
        $region36: #{tpu_custom_call.1} parent=27 // pred_fallthru
          _
        %s211 = sand.u32 %s53, 1
        %s212 = scalar_lea.sflag [#allocation3], %s211
        %s213 = sand.u32 %s53, 1
        %s214 = smul.addr %s213, 8
        %s215 = scalar_lea.vmem [#allocation2], %s214
        %p216 = pneg %p66
        %p217 = pneg %p63
        %s218 = sand.u32 %s83, 1
        %s219 = scalar_lea.sflag [#allocation6], %s218
        %s220 = sand.u32 %s83, 1
        %s221 = smul.addr %s220, 2
        %s222 = scalar_lea.vmem [#allocation5], %s221
        %p223 = pneg %p96
        %p224 = pneg %p93
        %p225 = pneg %p124
        %p226 = pneg %p121
        %s227 = sand.u32 %s111, 1
        %s228 = scalar_lea.sflag [#allocation4], %s227
        %s229 = sand.u32 %s111, 1
        %s230 = smul.addr %s229, 32
        %s231 = scalar_lea.vmem [#allocation7], %s230
        %s232 = sadd.s32 %s28, %s29
        %s233 = sadd.s32 %s28, %s29
        %p234 = scmp.eq.s32.totalorder %s29, 0
        // Predicated region
        $region37: #{tpu_custom_call.1} parent=27 // pred_check
          %p235 = pneg %p234
        $region38: #{tpu_custom_call.1} parent=27 // pred_check_branch
          %237 = sbr.rel (%p235) target = $region40
        $region39: #{tpu_custom_call.1} parent=27 // pred_region
          %238 = vst [vmem:[%s231] sm:$0xff] 0.0
          %239 = vst [vmem:[%s231 + $0x8] sm:$0xff] 0.0
          %240 = vst [vmem:[%s231 + $0x10] sm:$0xff] 0.0
          %241 = vst [vmem:[%s231 + $0x18] sm:$0xff] 0.0
        $region40: #{tpu_custom_call.1} parent=27 // pred_fallthru
          _
        %v242 = vld [vmem:[%s197] sm:$0x3]
        %v243 = vld [vmem:[%s197 + $0x2] sm:$0x3]
        %v244 = vld [vmem:[%s197 + $0x4] sm:$0x3]
        %v245 = vld [vmem:[%s197 + $0x6] sm:$0x3]
        %v246 = vld [vmem:[%s206] sm:$0x3]
        %vm247 = vcmask 1041408
        %v248 = vsel %vm247, %v242, -inf
        %v249 = vsel %vm247, %v243, -inf
        %v250 = vsel %vm247, %v244, -inf
        %v251 = vsel %vm247, %v245, -inf
        %v252 = vmax.f32 %v248, %v249
        %v253 = vmax.f32 %v250, %v251
        %v254 = vmax.f32 %v252, %v253
        %v255 = vsub.f32 %v242, %v254
        %v256 = vsub.f32 %v243, %v254
        %v257 = vsub.f32 %v244, %v254
        %v258 = vsub.f32 %v245, %v254
        %v259 = vmul.f32 %v255, 1.442695
        %v260 = vpow.pop %v259
        %v261 = vmul.f32 %v256, 1.442695
        %v262 = vpow.pop %v261
        %v263 = vmul.f32 %v257, 1.442695
        %v264 = vpow.pop %v263
        %v265 = vmul.f32 %v258, 1.442695
        %v266 = vpow.pop %v265
        %v267 = vsel %vm247, %v260, 0.0
        %v268 = vsel %vm247, %v262, 0.0
        %v269 = vadd.f32 %v267, %v268
        %v270 = vsel %vm247, %v264, 0.0
        %v271 = vadd.f32 %v269, %v270
        %v272 = vsel %vm247, %v266, 0.0
        %v273 = vadd.f32 %v271, %v272
        %v274 = vrcp.pop %v273
        %vm275 = vcmp.ge.s32.totalorder %v246, 0
        %v276 = vsel %vm275, 1, 0
        %v277 = vcvt.s32.f32 %v276
        %v278 = vmul.f32 %v274, %v277
        %v279 = vmul.f32 %v260, %v278
        %v280 = vmul.f32 %v262, %v278
        %v281 = vmul.f32 %v264, %v278
        %v282 = vmul.f32 %v266, %v278
        %vm283 = vcmp.eq.s32.totalorder %v246, 0
        %vm284 = vcmp.eq.s32.totalorder %v246, 1
        %vm285 = vcmp.eq.s32.totalorder %v246, 2
        %vm286 = vcmp.eq.s32.totalorder %v246, 3
        %v287 = vsel %vm283, %v279, 0.0
        %v288 = vsel %vm284, %v280, 0.0
        %v289 = vsel %vm285, %v281, 0.0
        %v290 = vsel %vm286, %v282, 0.0
        %v291 = vsel %vm247, %v287, 0.0
        %v292 = vrot.slane %v291, 4
        %v293 = vadd.f32 %v291, %v292
        %v294 = vrot.slane %v293, 2
        %v295 = vadd.f32 %v293, %v294
        %v296 = vrot.slane %v295, 1
        %v297 = vadd.f32 %v295, %v296
        %v298 = vsel %vm247, %v288, 0.0
        %v299 = vrot.slane %v298, 4
        %v300 = vadd.f32 %v298, %v299
        %v301 = vrot.slane %v300, 2
        %v302 = vadd.f32 %v300, %v301
        %v303 = vrot.slane %v302, 1
        %v304 = vadd.f32 %v302, %v303
        %v305 = vsel %vm247, %v289, 0.0
        %v306 = vrot.slane %v305, 4
        %v307 = vadd.f32 %v305, %v306
        %v308 = vrot.slane %v307, 2
        %v309 = vadd.f32 %v307, %v308
        %v310 = vrot.slane %v309, 1
        %v311 = vadd.f32 %v309, %v310
        %v312 = vsel %vm247, %v290, 0.0
        %v313 = vrot.slane %v312, 4
        %v314 = vadd.f32 %v312, %v313
        %v315 = vrot.slane %v314, 2
        %v316 = vadd.f32 %v314, %v315
        %v317 = vrot.slane %v316, 1
        %v318 = vadd.f32 %v316, %v317
        %v319 = vsel %vm247, %v279, 0.0
        %v320 = vrot.slane %v319, 4
        %v321 = vadd.f32 %v319, %v320
        %v322 = vrot.slane %v321, 2
        %v323 = vadd.f32 %v321, %v322
        %v324 = vrot.slane %v323, 1
        %v325 = vadd.f32 %v323, %v324
        %v326 = vsel %vm247, %v280, 0.0
        %v327 = vrot.slane %v326, 4
        %v328 = vadd.f32 %v326, %v327
        %v329 = vrot.slane %v328, 2
        %v330 = vadd.f32 %v328, %v329
        %v331 = vrot.slane %v330, 1
        %v332 = vadd.f32 %v330, %v331
        %v333 = vsel %vm247, %v281, 0.0
        %v334 = vrot.slane %v333, 4
        %v335 = vadd.f32 %v333, %v334
        %v336 = vrot.slane %v335, 2
        %v337 = vadd.f32 %v335, %v336
        %v338 = vrot.slane %v337, 1
        %v339 = vadd.f32 %v337, %v338
        %v340 = vsel %vm247, %v282, 0.0
        %v341 = vrot.slane %v340, 4
        %v342 = vadd.f32 %v340, %v341
        %v343 = vrot.slane %v342, 2
        %v344 = vadd.f32 %v342, %v343
        %v345 = vrot.slane %v344, 1
        %v346 = vadd.f32 %v344, %v345
        %v347 = vsel %vm283, 1.0, 0.0
        %v348 = vsel %vm284, 1.0, 0.0
        %v349 = vsel %vm285, 1.0, 0.0
        %v350 = vsel %vm286, 1.0, 0.0
        %v351 = vsel %vm247, %v347, 0.0
        %v352 = vrot.slane %v351, 4
        %v353 = vadd.f32 %v351, %v352
        %v354 = vrot.slane %v353, 2
        %v355 = vadd.f32 %v353, %v354
        %v356 = vrot.slane %v355, 1
        %v357 = vadd.f32 %v355, %v356
        %v358 = vsel %vm247, %v348, 0.0
        %v359 = vrot.slane %v358, 4
        %v360 = vadd.f32 %v358, %v359
        %v361 = vrot.slane %v360, 2
        %v362 = vadd.f32 %v360, %v361
        %v363 = vrot.slane %v362, 1
        %v364 = vadd.f32 %v362, %v363
        %v365 = vsel %vm247, %v349, 0.0
        %v366 = vrot.slane %v365, 4
        %v367 = vadd.f32 %v365, %v366
        %v368 = vrot.slane %v367, 2
        %v369 = vadd.f32 %v367, %v368
        %v370 = vrot.slane %v369, 1
        %v371 = vadd.f32 %v369, %v370
        %v372 = vsel %vm247, %v350, 0.0
        %v373 = vrot.slane %v372, 4
        %v374 = vadd.f32 %v372, %v373
        %v375 = vrot.slane %v374, 2
        %v376 = vadd.f32 %v374, %v375
        %v377 = vrot.slane %v376, 1
        %v378 = vadd.f32 %v376, %v377
        %v379 = vsel %vm283, %v255, 0.0
        %v380 = vsel %vm284, %v256, 0.0
        %v381 = vsel %vm285, %v257, 0.0
        %v382 = vsel %vm286, %v258, 0.0
        %v383 = vsel %vm247, %v379, 0.0
        %v384 = vsel %vm247, %v380, 0.0
        %v385 = vadd.f32 %v383, %v384
        %v386 = vsel %vm247, %v381, 0.0
        %v387 = vadd.f32 %v385, %v386
        %v388 = vsel %vm247, %v382, 0.0
        %v389 = vadd.f32 %v387, %v388
        %v390 = vlog2.pop %v273
        %v391 = vmul.f32 %v390, 0.6931472
        %v392 = vsub.f32 %v391, %v389
        %v393 = vmul.f32 %v392, %v277
        %v394 = vsel %vm247, %v393, 0.0
        %v395 = vrot.slane %v394, 4
        %v396 = vadd.f32 %v394, %v395
        %v397 = vrot.slane %v396, 2
        %v398 = vadd.f32 %v396, %v397
        %v399 = vrot.slane %v398, 1
        %v400 = vadd.f32 %v398, %v399
        %v401 = vld [vmem:[%s231] sm:$0xf]
        %vm406 = vcmask 1041409
        %v407 = vsel %vm406, %v304, %v297
        %vm408 = vcmask 1042434
        %v409 = vsel %vm408, %v311, %v407
        %vm410 = vcmask 1043459
        %v411 = vsel %vm410, %v318, %v409
        %v413 = vadd.f32 %v401, %v411
        %414 = vst [vmem:[%s231] sm:$0xf] %v413
        %v415 = vld [vmem:[%s231 + $0x8] sm:$0xf]
        %v420 = vsel %vm406, %v332, %v325
        %v421 = vsel %vm408, %v339, %v420
        %v422 = vsel %vm410, %v346, %v421
        %v424 = vadd.f32 %v415, %v422
        %425 = vst [vmem:[%s231 + $0x8] sm:$0xf] %v424
        %v426 = vld [vmem:[%s231 + $0x10] sm:$0xf]
        %v431 = vsel %vm406, %v364, %v357
        %v432 = vsel %vm408, %v371, %v431
        %v433 = vsel %vm410, %v378, %v432
        %v435 = vadd.f32 %v426, %v433
        %436 = vst [vmem:[%s231 + $0x10] sm:$0xf] %v435
        %v437 = vld [vmem:[%s231 + $0x18] sm:$0x1]
        %v438 = vadd.f32 %v437, %v400
        %439 = vst [vmem:[%s231 + $0x18] sm:$0x1] %v438
        %s440 = sand.u32 %s111, 1
        %s441 = scalar_lea.sflag [#allocation4], %s440
        %s442 = sand.u32 %s111, 1
        %s443 = smul.addr %s442, 32
        %s444 = scalar_lea.vmem [#allocation7], %s443
        // Predicated region
        $region41: #{tpu_custom_call.1} parent=27 // pred_check
          %p445 = pneg %p121
        $region42: #{tpu_custom_call.1} parent=27 // pred_check_branch
          %447 = sbr.rel (%p445) target = $region44
        $region43: #{tpu_custom_call.1} parent=27 // pred_region
          %s449 = ssub.s32 512, 512
          %450 = vsyncadd %s441, %s449
          %s451 = smul.addr %s28, 4
          %s452 = smul.addr %s27, 4
          %s453 = sadd.s32 %s451, %s452
          %s454 = smul.addr %s453, 128
          %s455 = scalar_lea.hbm %s2, %s454
          %s456 = sshll.u32 %s444, 4
          %s457 = int_to_ptr.vmem [resolvable:$true] %s456
          %462 = dma.vmem_to_hbm [thread:$0]  %s457, 512, %s455, %s441, 128, 128, 8
        $region44: #{tpu_custom_call.1} parent=27 // pred_fallthru
          _
      $region28: #{tpu_custom_call.1} parent=5 // pred_fallthru
        _
      %p463 = scmp.le.s32.totalorder 2, %s17
      // Predicated region
      $region45: #{tpu_custom_call.1} parent=5 // pred_check
        %p464 = pneg %p463
      $region46: #{tpu_custom_call.1} parent=5 // pred_check_branch
        %466 = sbr.rel (%p464) target = $region48
      $region47: #{tpu_custom_call.1} parent=5 // pred_region
        %s467 = ssub.s32 %s17, 2
        // Predicated region
        $region49: #{tpu_custom_call.1} parent=47 // pred_check
          %p468 = pneg %p127
        $region50: #{tpu_custom_call.1} parent=47 // pred_check_branch
          %470 = sbr.rel (%p468) target = $region52
        $region51: #{tpu_custom_call.1} parent=47 // pred_region
          %s471 = sand.u32 %s112, 1
          %s472 = scalar_lea.sflag [#allocation4], %s471
          %s473 = sand.u32 %s112, 1
          %s474 = smul.addr %s473, 32
          %s475 = scalar_lea.vmem [#allocation7], %s474
          %476 = dma.done %s472, 512
        $region52: #{tpu_custom_call.1} parent=47 // pred_fallthru
          _
      $region48: #{tpu_custom_call.1} parent=5 // pred_fallthru
        _
    $region6: #{tpu_custom_call.1} parent=1 // loop_footer
      %s21 = sadd.s32 1, %s17
    $region7: #{tpu_custom_call.1} parent=1 // loop_footer_branch
      %16 = sbr.rel target = $region3
    $region8: #{tpu_custom_call.1} parent=1 // loop_exit
      _
    %477 = vsyncpa [#allocation3], 1
    %s478 = scalar_lea.sflag [#allocation3], 1
    %479 = vsyncpa %s478, 1
    %480 = vsyncpa [#allocation6], 1
    %s481 = scalar_lea.sflag [#allocation6], 1
    %482 = vsyncpa %s481, 1
    %483 = vsyncpa [#allocation4], 1
    %s484 = scalar_lea.sflag [#allocation4], 1
    %485 = vsyncpa %s484, 1

</llo_original>
